<compile_context>
chip_gen: v5e
topology: v5e:2x2
jax: 0.10.0
libtpu: 0.0.40
codegen_flags: <defaults>
</compile_context>

<pallas_src>
import jax
import jax.numpy as jnp
from jax.experimental import pallas as pl
from jax.experimental.pallas import tpu as pltpu


def _bitblas_linear_kernel(xe_ref, xo_ref, xg_ref, qw_ref, st_ref, szt_ref, b_ref, o_ref):
    xe = xe_ref[...]          # (TM, Kh) bf16, even-k columns of x
    xo = xo_ref[...]          # (TM, Kh) bf16, odd-k  columns of x
    xg = xg_ref[...]          # (TM, G)  f32, per-group sums of x (for the zero-point fold)
    st = st_ref[...]          # (G, TN)  f32, scales (transposed)
    szt = szt_ref[...]        # (G, TN)  f32, scales * zeros (transposed)
    qw = qw_ref[...]          # (TN, Kh) uint8, packed 2x uint4 per byte

    tm = xe.shape[0]
    tn = qw.shape[0]
    g_count = st.shape[0]
    gh = xe.shape[1] // g_count          # packed bytes per quantization group

    nt = (((1,), (1,)), ((), ()))        # contract last dims of both: A @ W^T ('nt' layout)
    acc = jnp.zeros((tm, tn), jnp.float32)

    # Static per-group loop (G is a trace-time constant; G == 1 for group_size == -1).
    for g in range(g_count):
        sl = slice(g * gh, (g + 1) * gh)
        # Nibble extraction only — no per-element scale / zero arithmetic in the hot path.
        qg = qw[:, sl].astype(jnp.int32)
        q_lo = (qg & 0xF).astype(jnp.float32).astype(jnp.bfloat16)   # even k
        q_hi = (qg >> 4).astype(jnp.float32).astype(jnp.bfloat16)    # odd  k
        part = jax.lax.dot_general(xe[:, sl], q_lo, nt,
                                   preferred_element_type=jnp.float32)
        part = part + jax.lax.dot_general(xo[:, sl], q_hi, nt,
                                          preferred_element_type=jnp.float32)
        # (q - z) * s == q*s - z*s : scale applied to the small partial accumulator,
        # zero-point applied via the per-group activation sums.
        acc = acc + part * st[g:g + 1, :] - xg[:, g:g + 1] * szt[g:g + 1, :]

    acc = acc + b_ref[...]               # fused bias (zeros when bias is None)
    o_ref[...] = acc.astype(o_ref.dtype)


def bitblas_linear(x, qweight, scales, zeros, bias=None, *, tile_n=None, tile_m=256):
    M, K = x.shape
    N, Kh = qweight.shape
    assert Kh * 2 == K, "qweight must pack 2 uint4 per byte along K"
    G = scales.shape[1]
    gs = K // G
    assert gs % 2 == 0, "group_size must be even"
    assert Kh % G == 0
    out_dtype = x.dtype

    # tile_n: as large as possible while keeping >= 2 grid steps along N (v7x megacore).
    if tile_n is None:
        tile_n = N
        for c in (256, 128):
            if N % c == 0 and N // c >= 2:
                tile_n = c
                break
    assert N % tile_n == 0

    # tile_m: tile large / prefill-shaped M; small M stays a single (full) block.
    tm = tile_m if (M >= tile_m and M % tile_m == 0) else M

    # ---- wrapper-side layout glue (cheap for decode-shaped M) ----
    # bf16 MXU feed; even/odd de-interleave pairs x columns with low/high nibbles.
    xb = x.astype(jnp.bfloat16)
    x_even = xb[:, 0::2]                                         # (M, Kh)
    x_odd = xb[:, 1::2]                                          # (M, Kh)
    # Per-group activation sums (computed from the same bf16-rounded x the MXU sees).
    xg = xb.astype(jnp.float32).reshape(M, G, gs).sum(axis=2)    # (M, G)
    # Tiny (G, N) metadata — no jnp.repeat expansion to (N, K//2) anymore.
    s_t = scales.astype(jnp.float32).T                           # (G, N)
    sz_t = (scales.astype(jnp.float32) * zeros.astype(jnp.float32)).T   # (G, N)
    if bias is None:
        b = jnp.zeros((1, N), jnp.float32)
    else:
        b = bias.astype(jnp.float32).reshape(1, N)

    out = pl.pallas_call(
        _bitblas_linear_kernel,
        out_shape=jax.ShapeDtypeStruct((M, N), jnp.bfloat16),
        grid_spec=pltpu.PrefetchScalarGridSpec(
            num_scalar_prefetch=0,
            grid=(M // tm, N // tile_n),
            in_specs=[
                pl.BlockSpec((tm, Kh), lambda i, j: (i, 0)),        # x even columns
                pl.BlockSpec((tm, Kh), lambda i, j: (i, 0)),        # x odd columns
                pl.BlockSpec((tm, G), lambda i, j: (i, 0)),         # per-group x sums
                pl.BlockSpec((tile_n, Kh), lambda i, j: (j, 0)),    # packed uint4 weights
                pl.BlockSpec((G, tile_n), lambda i, j: (0, j)),     # scales^T (G, N)
                pl.BlockSpec((G, tile_n), lambda i, j: (0, j)),     # (scales*zeros)^T (G, N)
                pl.BlockSpec((1, tile_n), lambda i, j: (0, j)),     # bias
            ],
            out_specs=pl.BlockSpec((tm, tile_n), lambda i, j: (i, j)),
        ),
        compiler_params=pltpu.CompilerParams(
            dimension_semantics=("parallel", "parallel")),
    )(x_even, x_odd, xg, qweight, s_t, sz_t, b)

    return out.astype(out_dtype)


if __name__ == "__main__":
    key = jax.random.PRNGKey(0)
    k_x, k_w = jax.random.split(key)

    batch = 2
    in_features = 256
    out_features = 256
    nbits = 4
    group_size = -1                      # module default: group_size = in_features
    gs = in_features if group_size == -1 else group_size
    w_scale = 0.02
    w_shift = 8.0

    # Deterministic synthetic parameters, mirroring BitBlassLinear.__init__:
    x = jax.random.normal(k_x, (batch, in_features), dtype=jnp.float32).astype(jnp.float16)
    # torch.randint(0, 2**nbits - 1, (out_features, in_features // 2), dtype=uint8)
    qweight = jax.random.randint(
        k_w, (out_features, in_features // 2), 0, 2 ** nbits - 1, dtype=jnp.int32
    ).astype(jnp.uint8)
    scales = (jnp.ones((out_features, in_features // gs), jnp.float32) * w_scale).astype(jnp.float16)
    zeros = (jnp.ones((out_features, in_features // gs), jnp.float32) * w_shift).astype(jnp.float16)
    bias = None

    out = bitblas_linear(x, qweight, scales, zeros, bias=bias)
    out = jax.block_until_ready(out)
    assert out.shape == (batch, out_features) and out.dtype == jnp.float16

    # Pure-JAX reference for correctness.
    qi = qweight.astype(jnp.int32)
    w_unpacked = jnp.stack([qi & 0xF, (qi >> 4) & 0xF], axis=-1).reshape(out_features, in_features)
    s_full = jnp.repeat(scales.astype(jnp.float32), gs, axis=1)
    z_full = jnp.repeat(zeros.astype(jnp.float32), gs, axis=1)
    w_dq = (w_unpacked.astype(jnp.float32) - z_full) * s_full
    ref = x.astype(jnp.float32) @ w_dq.T
    assert jnp.allclose(out.astype(jnp.float32), ref, rtol=2e-2, atol=2e-2)

    print("KERNEL_OK")
</pallas_src>

<mosaic_0001>
module attributes {stable_mosaic.version = 11 : i64} {
  func.func @_bitblas_linear_kernel(%arg0: i32, %arg1: i32, %arg2: memref<2x128xbf16, #tpu.memory_space<vmem>>, %arg3: memref<2x128xbf16, #tpu.memory_space<vmem>>, %arg4: memref<2x1xf32, #tpu.memory_space<vmem>>, %arg5: memref<128x128xi8, #tpu.memory_space<vmem>>, %arg6: memref<1x128xf32, #tpu.memory_space<vmem>>, %arg7: memref<1x128xf32, #tpu.memory_space<vmem>>, %arg8: memref<1x128xf32, #tpu.memory_space<vmem>>, %arg9: memref<2x128xbf16, #tpu.memory_space<vmem>>) attributes {dimension_semantics = [#tpu.dimension_semantics<parallel>, #tpu.dimension_semantics<parallel>], iteration_bounds = array<i64: 1, 2>, scalar_prefetch = 0 : i64, scratch_operands = 0 : i64, tpu.core_type = #tpu.core_type<tc>, window_params = [{transform_indices = @transform_0, window_bounds = array<i64: 2, 128>}, {transform_indices = @transform_1, window_bounds = array<i64: 2, 128>}, {transform_indices = @transform_2, window_bounds = array<i64: 2, 1>}, {transform_indices = @transform_3, window_bounds = array<i64: 128, 128>}, {transform_indices = @transform_4, window_bounds = array<i64: 1, 128>}, {transform_indices = @transform_5, window_bounds = array<i64: 1, 128>}, {transform_indices = @transform_6, window_bounds = array<i64: 1, 128>}, {transform_indices = @transform_7, window_bounds = array<i64: 2, 128>}]} {
    %c0 = arith.constant 0 : index
    %c0_0 = arith.constant 0 : index
    %0 = vector.load %arg2[%c0, %c0_0] : memref<2x128xbf16, #tpu.memory_space<vmem>>, vector<2x128xbf16>
    %c0_1 = arith.constant 0 : index
    %c0_2 = arith.constant 0 : index
    %1 = vector.load %arg3[%c0_1, %c0_2] : memref<2x128xbf16, #tpu.memory_space<vmem>>, vector<2x128xbf16>
    %c0_3 = arith.constant 0 : index
    %c0_4 = arith.constant 0 : index
    %2 = vector.load %arg4[%c0_3, %c0_4] : memref<2x1xf32, #tpu.memory_space<vmem>>, vector<2x1xf32>
    %c0_5 = arith.constant 0 : index
    %c0_6 = arith.constant 0 : index
    %3 = vector.load %arg6[%c0_5, %c0_6] : memref<1x128xf32, #tpu.memory_space<vmem>>, vector<1x128xf32>
    %c0_7 = arith.constant 0 : index
    %c0_8 = arith.constant 0 : index
    %4 = vector.load %arg7[%c0_7, %c0_8] : memref<1x128xf32, #tpu.memory_space<vmem>>, vector<1x128xf32>
    %c0_9 = arith.constant 0 : index
    %c0_10 = arith.constant 0 : index
    %5 = vector.load %arg5[%c0_9, %c0_10] : memref<128x128xi8, #tpu.memory_space<vmem>>, vector<128x128xi8>
    %cst = arith.constant 0.000000e+00 : f32
    %6 = vector.broadcast %cst : f32 to vector<2x128xf32>
    %7 = arith.extui %5 : vector<128x128xi8> to vector<128x128xi32>
    %c15_i32 = arith.constant 15 : i32
    %8 = vector.broadcast %c15_i32 : i32 to vector<128x128xi32>
    %9 = arith.andi %7, %8 : vector<128x128xi32>
    %10 = arith.sitofp %9 : vector<128x128xi32> to vector<128x128xf32>
    %11 = arith.truncf %10 : vector<128x128xf32> to vector<128x128xbf16>
    %c4_i32 = arith.constant 4 : i32
    %12 = vector.broadcast %c4_i32 : i32 to vector<128x128xi32>
    %13 = arith.shrsi %7, %12 : vector<128x128xi32>
    %14 = arith.sitofp %13 : vector<128x128xi32> to vector<128x128xf32>
    %15 = arith.truncf %14 : vector<128x128xf32> to vector<128x128xbf16>
    %cst_11 = arith.constant dense<0.000000e+00> : vector<2x128xf32>
    %16 = tpu.matmul %0, %11, %cst_11 {dimension_numbers = #tpu.dot_dimension_numbers<[1], [1], [0], [0], [0, 0, 1, 0], [], []>} : vector<2x128xbf16>, vector<128x128xbf16>, vector<2x128xf32> -> vector<2x128xf32>
    %cst_12 = arith.constant dense<0.000000e+00> : vector<2x128xf32>
    %17 = tpu.matmul %1, %15, %cst_12 {dimension_numbers = #tpu.dot_dimension_numbers<[1], [1], [0], [0], [0, 0, 1, 0], [], []>} : vector<2x128xbf16>, vector<128x128xbf16>, vector<2x128xf32> -> vector<2x128xf32>
    %18 = arith.addf %16, %17 : vector<2x128xf32>
    %19 = vector.broadcast %3 : vector<1x128xf32> to vector<2x128xf32>
    %20 = arith.mulf %18, %19 : vector<2x128xf32>
    %21 = arith.addf %6, %20 : vector<2x128xf32>
    %22 = vector.broadcast %2 : vector<2x1xf32> to vector<2x128xf32>
    %23 = vector.broadcast %4 : vector<1x128xf32> to vector<2x128xf32>
    %24 = arith.mulf %22, %23 : vector<2x128xf32>
    %25 = arith.subf %21, %24 : vector<2x128xf32>
    %c0_13 = arith.constant 0 : index
    %c0_14 = arith.constant 0 : index
    %26 = vector.load %arg8[%c0_13, %c0_14] : memref<1x128xf32, #tpu.memory_space<vmem>>, vector<1x128xf32>
    %27 = vector.broadcast %26 : vector<1x128xf32> to vector<2x128xf32>
    %28 = arith.addf %25, %27 : vector<2x128xf32>
    %29 = arith.truncf %28 : vector<2x128xf32> to vector<2x128xbf16>
    %c0_15 = arith.constant 0 : index
    %c0_16 = arith.constant 0 : index
    %30 = vector.load %arg9[%c0_15, %c0_16] : memref<2x128xbf16, #tpu.memory_space<vmem>>, vector<2x128xbf16>
    tpu.vector_store %arg9[%c0_15, %c0_16], %29 {strides = array<i32>} : memref<2x128xbf16, #tpu.memory_space<vmem>>, vector<2x128xbf16>,
    return
  }
  func.func @transform_0(%arg0: i32, %arg1: i32) -> (i32, i32) {
    %c0_i32 = arith.constant 0 : i32
    %c0_i32_0 = arith.constant 0 : i32
    return %arg0, %c0_i32 : i32, i32
  }
  func.func @transform_1(%arg0: i32, %arg1: i32) -> (i32, i32) {
    %c0_i32 = arith.constant 0 : i32
    %c0_i32_0 = arith.constant 0 : i32
    return %arg0, %c0_i32 : i32, i32
  }
  func.func @transform_2(%arg0: i32, %arg1: i32) -> (i32, i32) {
    %c0_i32 = arith.constant 0 : i32
    %c0_i32_0 = arith.constant 0 : i32
    return %arg0, %c0_i32 : i32, i32
  }
  func.func @transform_3(%arg0: i32, %arg1: i32) -> (i32, i32) {
    %c0_i32 = arith.constant 0 : i32
    %c0_i32_0 = arith.constant 0 : i32
    return %arg1, %c0_i32 : i32, i32
  }
  func.func @transform_4(%arg0: i32, %arg1: i32) -> (i32, i32) {
    %c0_i32 = arith.constant 0 : i32
    %c0_i32_0 = arith.constant 0 : i32
    return %c0_i32, %arg1 : i32, i32
  }
  func.func @transform_5(%arg0: i32, %arg1: i32) -> (i32, i32) {
    %c0_i32 = arith.constant 0 : i32
    %c0_i32_0 = arith.constant 0 : i32
    return %c0_i32, %arg1 : i32, i32
  }
  func.func @transform_6(%arg0: i32, %arg1: i32) -> (i32, i32) {
    %c0_i32 = arith.constant 0 : i32
    %c0_i32_0 = arith.constant 0 : i32
    return %c0_i32, %arg1 : i32, i32
  }
  func.func @transform_7(%arg0: i32, %arg1: i32) -> (i32, i32) {
    %c0_i32 = arith.constant 0 : i32
    return %arg0, %arg1 : i32, i32
  }
}

</mosaic_0001>

<llo_original>
// kernel: tpu_custom_call.1
$region0: #{tpu_custom_call.1}
  #allocation0 [shape = 'u32[]', space=smem, size = 0x4, offset = 0x4, fixed_abs, tag = 'smem constant byte address 0x4 - core index']
  #allocation1 [shape = 'u32[72,128]{1,0:T(1,128)}', space=vmem, size = 0x9000, scoped, tag = 'internal scratch']
  %s0 = inlined_call_operand.vmem [shape: bf16[2,128], index: 0, kind: input, shape index: {}]
  %s1 = inlined_call_operand.hbm [shape: bf16[2,128], index: 1, kind: input, shape index: {}]
  %s2 = inlined_call_operand.vmem [shape: f32[2,1], index: 2, kind: input, shape index: {}]
  %s3 = inlined_call_operand.hbm [shape: u8[256,128], index: 3, kind: input, shape index: {}]
  %s4 = inlined_call_operand.vmem [shape: f32[1,256], index: 4, kind: input, shape index: {}]
  %s5 = inlined_call_operand.vmem [shape: f32[1,256], index: 5, kind: input, shape index: {}]
  %s6 = inlined_call_operand.vmem [shape: f32[1,256], index: 6, kind: input, shape index: {}]
  %s7 = inlined_call_operand.hbm [shape: bf16[2,256], index: 7, kind: output, shape index: {}]
  %s8 = sld [smem:[#allocation0]]
  $region69: #{tpu_custom_call.1} parent=0
    _
  %s10 = ssub.s32 1, %s8
  %s11 = scalar_select 0, %s10, %s8
  $region1: #{tpu_custom_call.1} parent=0
    #allocation2 [shape = 'u8[512]{0}', space=vmem, size = 0x400, scoped, tag = 'input window, operand 1, single buffered']
    #allocation3 [shape = 's32[2]{0}', space=sflag, size = 0x8, scoped, tag = 'scoped memory for tpu_custom_call.1']
    #allocation4 [shape = 's32[2]{0}', space=sflag, size = 0x8, scoped, tag = 'scoped memory for tpu_custom_call.1']
    #allocation5 [shape = 'u8[32768]{0}', space=vmem, size = 0x8000, scoped, tag = 'input window, operand 3']
    #allocation6 [shape = 's32[2]{0}', space=sflag, size = 0x8, scoped, tag = 'scoped memory for tpu_custom_call.1']
    #allocation7 [shape = 'u8[1024]{0}', space=vmem, size = 0x400, scoped, tag = 'output window, operand 0']
    %12 = vsyncpa [#allocation3], 0
    %13 = vsyncpa [#allocation6], 0
    %s14 = scalar_lea.sflag [#allocation6], 1
    %15 = vsyncpa %s14, 0
    %16 = vsyncpa [#allocation4], 0
    %s17 = scalar_lea.sflag [#allocation4], 1
    %18 = vsyncpa %s17, 0
    loop: start=0, step=1, limit=4
    $region2: #{tpu_custom_call.1} parent=1 // loop_pre_header
      _
    $region3: #{tpu_custom_call.1} parent=1 // loop_header
      %s20 = sphi 0, %s24
      %p21 = scmp.ge.s32.totalorder %s20, 4
      %s27 = sphi 0, %s39
      %s28 = sphi 0, %s35
      %s29 = sphi 0, %s27
      %s30 = sphi 0, %s28
      %s31 = sphi 0, %s29
      %s32 = sphi 0, %s30
      %s42 = sphi 0, %s44
      %s45 = sphi 0, %s42
      %s46 = sphi 0, %s45
      %s62 = sphi 0, %s46
      %s68 = sphi 0, %s70
      %s71 = sphi 0, %s68
      %s72 = sphi 0, %s71
      %s88 = sphi 0, %s72
      %s94 = sphi 0, %s96
      %s97 = sphi 0, %s94
      %s98 = sphi 0, %s97
      %s114 = sphi 0, %s98
      %s120 = sphi 0, %s122
      %s123 = sphi 0, %s120
      %s124 = sphi 0, %s123
      %s140 = sphi 0, %s124
      %s146 = sphi 0, %s148
      %s149 = sphi 0, %s146
      %s150 = sphi 0, %s149
      %s166 = sphi 0, %s150
      %s172 = sphi 0, %s174
      %s175 = sphi 0, %s172
      %s176 = sphi 0, %s175
      %s192 = sphi 0, %s176
      %s198 = sphi 0, %s200
      %s201 = sphi 0, %s198
      %s202 = sphi 0, %s201
      %s218 = sphi 0, %s202
      %s226 = sphi 0, %s228
      %s229 = sphi 0, %s226
      %s230 = sphi 0, %s229
      %s246 = sphi 0, %s230
    $region4: #{tpu_custom_call.1} parent=1 // loop_header_branch
      %23 = sbr.rel (%p21) target = $region8
    $region5: #{tpu_custom_call.1} parent=1 // loop_body
      %s25 = ssub.s32 %s20, 1
      %s26 = ssub.s32 %s20, 2
      %s33 = sadd.s32 1, %s28
      %p34 = scmp.ge.s32.totalorder %s33, 2
      %s35 = scalar_select %p34, 0, %s33
      %s36 = sadd.s32 1, %s27
      %s37 = scalar_select %p34, %s36, %s27
      %p38 = scmp.ge.s32.totalorder %s37, 1
      %s39 = scalar_select %p38, 0, %s37
      %s40 = ssub.s32 %s27, %s39
      %p41 = scmp.eq.s32.totalorder %s40, 0
      %s43 = sadd.s32 %s42, 1
      %s44 = scalar_select %p41, %s42, %s43
      %p47 = pneg %p41
      %p48 = scmp.eq.s32.totalorder %s20, 1
      %p49 = por %p47, %p48
      %p50 = scmp.ne.s32.totalorder %s42, %s45
      %p51 = scmp.eq.s32.totalorder %s20, 0
      %p52 = por %p50, %p51
      %p53 = scmp.ne.s32.totalorder %s42, %s45
      %p54 = scmp.eq.s32.totalorder %s25, 1
      %p55 = por %p53, %p54
      %p56 = scmp.ne.s32.totalorder %s45, %s46
      %p57 = scmp.eq.s32.totalorder %s25, 0
      %p58 = por %p56, %p57
      %p59 = scmp.ne.s32.totalorder %s45, %s46
      %p60 = scmp.eq.s32.totalorder %s26, 1
      %p61 = por %p59, %p60
      %p63 = scmp.ne.s32.totalorder %s46, %s62
      %p64 = scmp.eq.s32.totalorder %s26, 0
      %p65 = por %p63, %p64
      %s66 = ssub.s32 %s27, %s39
      %p67 = scmp.eq.s32.totalorder %s66, 0
      %s69 = sadd.s32 %s68, 1
      %s70 = scalar_select %p67, %s68, %s69
      %p73 = pneg %p67
      %p74 = scmp.eq.s32.totalorder %s20, 1
      %p75 = por %p73, %p74
      %p76 = scmp.ne.s32.totalorder %s68, %s71
      %p77 = scmp.eq.s32.totalorder %s20, 0
      %p78 = por %p76, %p77
      %p79 = scmp.ne.s32.totalorder %s68, %s71
      %p80 = scmp.eq.s32.totalorder %s25, 1
      %p81 = por %p79, %p80
      %p82 = scmp.ne.s32.totalorder %s71, %s72
      %p83 = scmp.eq.s32.totalorder %s25, 0
      %p84 = por %p82, %p83
      %p85 = scmp.ne.s32.totalorder %s71, %s72
      %p86 = scmp.eq.s32.totalorder %s26, 1
      %p87 = por %p85, %p86
      %p89 = scmp.ne.s32.totalorder %s72, %s88
      %p90 = scmp.eq.s32.totalorder %s26, 0
      %p91 = por %p89, %p90
      %s92 = ssub.s32 %s27, %s39
      %p93 = scmp.eq.s32.totalorder %s92, 0
      %s95 = sadd.s32 %s94, 1
      %s96 = scalar_select %p93, %s94, %s95
      %p99 = pneg %p93
      %p100 = scmp.eq.s32.totalorder %s20, 1
      %p101 = por %p99, %p100
      %p102 = scmp.ne.s32.totalorder %s94, %s97
      %p103 = scmp.eq.s32.totalorder %s20, 0
      %p104 = por %p102, %p103
      %p105 = scmp.ne.s32.totalorder %s94, %s97
      %p106 = scmp.eq.s32.totalorder %s25, 1
      %p107 = por %p105, %p106
      %p108 = scmp.ne.s32.totalorder %s97, %s98
      %p109 = scmp.eq.s32.totalorder %s25, 0
      %p110 = por %p108, %p109
      %p111 = scmp.ne.s32.totalorder %s97, %s98
      %p112 = scmp.eq.s32.totalorder %s26, 1
      %p113 = por %p111, %p112
      %p115 = scmp.ne.s32.totalorder %s98, %s114
      %p116 = scmp.eq.s32.totalorder %s26, 0
      %p117 = por %p115, %p116
      %s118 = ssub.s32 %s28, %s35
      %p119 = scmp.eq.s32.totalorder %s118, 0
      %s121 = sadd.s32 %s120, 1
      %s122 = scalar_select %p119, %s120, %s121
      %p125 = pneg %p119
      %p126 = scmp.eq.s32.totalorder %s20, 1
      %p127 = por %p125, %p126
      %p128 = scmp.ne.s32.totalorder %s120, %s123
      %p129 = scmp.eq.s32.totalorder %s20, 0
      %p130 = por %p128, %p129
      %p131 = scmp.ne.s32.totalorder %s120, %s123
      %p132 = scmp.eq.s32.totalorder %s25, 1
      %p133 = por %p131, %p132
      %p134 = scmp.ne.s32.totalorder %s123, %s124
      %p135 = scmp.eq.s32.totalorder %s25, 0
      %p136 = por %p134, %p135
      %p137 = scmp.ne.s32.totalorder %s123, %s124
      %p138 = scmp.eq.s32.totalorder %s26, 1
      %p139 = por %p137, %p138
      %p141 = scmp.ne.s32.totalorder %s124, %s140
      %p142 = scmp.eq.s32.totalorder %s26, 0
      %p143 = por %p141, %p142
      %s144 = ssub.s32 %s28, %s35
      %p145 = scmp.eq.s32.totalorder %s144, 0
      %s147 = sadd.s32 %s146, 1
      %s148 = scalar_select %p145, %s146, %s147
      %p151 = pneg %p145
      %p152 = scmp.eq.s32.totalorder %s20, 1
      %p153 = por %p151, %p152
      %p154 = scmp.ne.s32.totalorder %s146, %s149
      %p155 = scmp.eq.s32.totalorder %s20, 0
      %p156 = por %p154, %p155
      %p157 = scmp.ne.s32.totalorder %s146, %s149
      %p158 = scmp.eq.s32.totalorder %s25, 1
      %p159 = por %p157, %p158
      %p160 = scmp.ne.s32.totalorder %s149, %s150
      %p161 = scmp.eq.s32.totalorder %s25, 0
      %p162 = por %p160, %p161
      %p163 = scmp.ne.s32.totalorder %s149, %s150
      %p164 = scmp.eq.s32.totalorder %s26, 1
      %p165 = por %p163, %p164
      %p167 = scmp.ne.s32.totalorder %s150, %s166
      %p168 = scmp.eq.s32.totalorder %s26, 0
      %p169 = por %p167, %p168
      %s170 = ssub.s32 %s28, %s35
      %p171 = scmp.eq.s32.totalorder %s170, 0
      %s173 = sadd.s32 %s172, 1
      %s174 = scalar_select %p171, %s172, %s173
      %p177 = pneg %p171
      %p178 = scmp.eq.s32.totalorder %s20, 1
      %p179 = por %p177, %p178
      %p180 = scmp.ne.s32.totalorder %s172, %s175
      %p181 = scmp.eq.s32.totalorder %s20, 0
      %p182 = por %p180, %p181
      %p183 = scmp.ne.s32.totalorder %s172, %s175
      %p184 = scmp.eq.s32.totalorder %s25, 1
      %p185 = por %p183, %p184
      %p186 = scmp.ne.s32.totalorder %s175, %s176
      %p187 = scmp.eq.s32.totalorder %s25, 0
      %p188 = por %p186, %p187
      %p189 = scmp.ne.s32.totalorder %s175, %s176
      %p190 = scmp.eq.s32.totalorder %s26, 1
      %p191 = por %p189, %p190
      %p193 = scmp.ne.s32.totalorder %s176, %s192
      %p194 = scmp.eq.s32.totalorder %s26, 0
      %p195 = por %p193, %p194
      %s196 = ssub.s32 %s28, %s35
      %p197 = scmp.eq.s32.totalorder %s196, 0
      %s199 = sadd.s32 %s198, 1
      %s200 = scalar_select %p197, %s198, %s199
      %p203 = pneg %p197
      %p204 = scmp.eq.s32.totalorder %s20, 1
      %p205 = por %p203, %p204
      %p206 = scmp.ne.s32.totalorder %s198, %s201
      %p207 = scmp.eq.s32.totalorder %s20, 0
      %p208 = por %p206, %p207
      %p209 = scmp.ne.s32.totalorder %s198, %s201
      %p210 = scmp.eq.s32.totalorder %s25, 1
      %p211 = por %p209, %p210
      %p212 = scmp.ne.s32.totalorder %s201, %s202
      %p213 = scmp.eq.s32.totalorder %s25, 0
      %p214 = por %p212, %p213
      %p215 = scmp.ne.s32.totalorder %s201, %s202
      %p216 = scmp.eq.s32.totalorder %s26, 1
      %p217 = por %p215, %p216
      %p219 = scmp.ne.s32.totalorder %s202, %s218
      %p220 = scmp.eq.s32.totalorder %s26, 0
      %p221 = por %p219, %p220
      %s222 = ssub.s32 %s27, %s39
      %s223 = ssub.s32 %s28, %s35
      %s224 = sor.u32 %s222, %s223
      %p225 = scmp.eq.s32.totalorder %s224, 0
      %s227 = sadd.s32 %s226, 1
      %s228 = scalar_select %p225, %s226, %s227
      %p231 = pneg %p225
      %p232 = scmp.eq.s32.totalorder %s20, 1
      %p233 = por %p231, %p232
      %p234 = scmp.ne.s32.totalorder %s226, %s229
      %p235 = scmp.eq.s32.totalorder %s20, 0
      %p236 = por %p234, %p235
      %p237 = scmp.ne.s32.totalorder %s226, %s229
      %p238 = scmp.eq.s32.totalorder %s25, 1
      %p239 = por %p237, %p238
      %p240 = scmp.ne.s32.totalorder %s229, %s230
      %p241 = scmp.eq.s32.totalorder %s25, 0
      %p242 = por %p240, %p241
      %p243 = scmp.ne.s32.totalorder %s229, %s230
      %p244 = scmp.eq.s32.totalorder %s26, 1
      %p245 = por %p243, %p244
      %p247 = scmp.ne.s32.totalorder %s230, %s246
      %p248 = scmp.eq.s32.totalorder %s26, 0
      %p249 = por %p247, %p248
      %p250 = scmp.le.s32.totalorder 1, %s20
      %p251 = scmp.lt.s32.totalorder %s20, 3
      %p252 = pnand %p250, %p251
      %p253 = pneg %p252
      // Predicated region
      $region9: #{tpu_custom_call.1} parent=5 // pred_check
        _
      $region10: #{tpu_custom_call.1} parent=5 // pred_check_branch
        %255 = sbr.rel (%p252) target = $region12
      $region11: #{tpu_custom_call.1} parent=5 // pred_region
        %s256 = ssub.s32 %s20, 1
        // Predicated region
        $region13: #{tpu_custom_call.1} parent=11 // pred_check
          %p257 = pneg %p58
        $region14: #{tpu_custom_call.1} parent=11 // pred_check_branch
          %259 = sbr.rel (%p257) target = $region16
        $region15: #{tpu_custom_call.1} parent=11 // pred_region
          %p260 = scmp.lt.s32.totalorder %s29, 0
          %s261 = scalar_select %p260, %s29, 0
          %s262 = scalar_lea.vmem %s0, %s261
        $region16: #{tpu_custom_call.1} parent=11 // pred_fallthru
          _
        // Predicated region
        $region17: #{tpu_custom_call.1} parent=11 // pred_check
          %p263 = pneg %p84
        $region18: #{tpu_custom_call.1} parent=11 // pred_check_branch
          %265 = sbr.rel (%p263) target = $region20
        $region19: #{tpu_custom_call.1} parent=11 // pred_region
          %267 = vsyncadd [#allocation3], 0
          %s268 = scalar_lea.hbm %s1, %s29
          %s270 = sshll.u32 %s268, 4
          %s271 = int_to_ptr.hbm [resolvable:$true] %s270
          %s272 = sshll.u32 [#allocation2], 4
          %s273 = int_to_ptr.vmem [resolvable:$true] %s272
          %275 = dma.hbm_to_vmem [thread:$0]  %s271, 16, %s273, [#allocation3]
        $region20: #{tpu_custom_call.1} parent=11 // pred_fallthru
          _
        // Predicated region
        $region21: #{tpu_custom_call.1} parent=11 // pred_check
          %p276 = pneg %p110
        $region22: #{tpu_custom_call.1} parent=11 // pred_check_branch
          %278 = sbr.rel (%p276) target = $region24
        $region23: #{tpu_custom_call.1} parent=11 // pred_region
          %p279 = scmp.lt.s32.totalorder %s29, 0
          %s280 = scalar_select %p279, %s29, 0
          %s281 = smul.addr %s280, 2
          %s282 = scalar_lea.vmem %s2, %s281
        $region24: #{tpu_custom_call.1} parent=11 // pred_fallthru
          _
      $region12: #{tpu_custom_call.1} parent=5 // pred_fallthru
        _
      %p283 = scmp.lt.s32.totalorder %s20, 2
      // Predicated region
      $region25: #{tpu_custom_call.1} parent=5 // pred_check
        %p284 = pneg %p283
      $region26: #{tpu_custom_call.1} parent=5 // pred_check_branch
        %286 = sbr.rel (%p284) target = $region28
      $region27: #{tpu_custom_call.1} parent=5 // pred_region
        // Predicated region
        $region29: #{tpu_custom_call.1} parent=27 // pred_check
          %p287 = pneg %p130
        $region30: #{tpu_custom_call.1} parent=27 // pred_check_branch
          %289 = sbr.rel (%p287) target = $region32
        $region31: #{tpu_custom_call.1} parent=27 // pred_region
          %s290 = sand.u32 %s120, 1
          %s291 = scalar_lea.sflag [#allocation6], %s290
          %s292 = sand.u32 %s120, 1
          %s293 = smul.addr %s292, 32
          %s294 = scalar_lea.vmem [#allocation5], %s293
          %s295 = smul.u32 4, %s28
          %297 = vsyncadd %s291, 0
          %s298 = smul.addr %s295, 8
          %s299 = scalar_lea.hbm %s3, %s298
          %s300 = sshll.u32 %s299, 4
          %s301 = int_to_ptr.hbm [resolvable:$true] %s300
          %s302 = sshll.u32 %s294, 4
          %s303 = int_to_ptr.vmem [resolvable:$true] %s302
          %308 = dma.hbm_to_vmem [thread:$0]  %s301, 512, %s303, %s291, 128, 128, 8
        $region32: #{tpu_custom_call.1} parent=27 // pred_fallthru
          _
        // Predicated region
        $region33: #{tpu_custom_call.1} parent=27 // pred_check
          %p309 = pneg %p156
        $region34: #{tpu_custom_call.1} parent=27 // pred_check_branch
          %311 = sbr.rel (%p309) target = $region36
        $region35: #{tpu_custom_call.1} parent=27 // pred_region
          %p312 = scmp.lt.s32.totalorder %s28, 1
          %s313 = scalar_select %p312, %s28, 1
          %s314 = scalar_lea.vmem %s4, %s313
        $region36: #{tpu_custom_call.1} parent=27 // pred_fallthru
          _
        // Predicated region
        $region37: #{tpu_custom_call.1} parent=27 // pred_check
          %p315 = pneg %p182
        $region38: #{tpu_custom_call.1} parent=27 // pred_check_branch
          %317 = sbr.rel (%p315) target = $region40
        $region39: #{tpu_custom_call.1} parent=27 // pred_region
          %p318 = scmp.lt.s32.totalorder %s28, 1
          %s319 = scalar_select %p318, %s28, 1
          %s320 = scalar_lea.vmem %s5, %s319
        $region40: #{tpu_custom_call.1} parent=27 // pred_fallthru
          _
        // Predicated region
        $region41: #{tpu_custom_call.1} parent=27 // pred_check
          %p321 = pneg %p208
        $region42: #{tpu_custom_call.1} parent=27 // pred_check_branch
          %323 = sbr.rel (%p321) target = $region44
        $region43: #{tpu_custom_call.1} parent=27 // pred_region
          %p324 = scmp.lt.s32.totalorder %s28, 1
          %s325 = scalar_select %p324, %s28, 1
          %s326 = scalar_lea.vmem %s6, %s325
        $region44: #{tpu_custom_call.1} parent=27 // pred_fallthru
          _
      $region28: #{tpu_custom_call.1} parent=5 // pred_fallthru
        _
      %p327 = scmp.le.s32.totalorder 1, %s20
      %p328 = scmp.lt.s32.totalorder %s20, 3
      %p329 = pnand %p327, %p328
      %p330 = pneg %p329
      // Predicated region
      $region45: #{tpu_custom_call.1} parent=5 // pred_check
        _
      $region46: #{tpu_custom_call.1} parent=5 // pred_check_branch
        %332 = sbr.rel (%p329) target = $region48
      $region47: #{tpu_custom_call.1} parent=5 // pred_region
        %s333 = ssub.s32 %s20, 1
        // Predicated region
        $region49: #{tpu_custom_call.1} parent=47 // pred_check
          %p334 = pneg %p84
        $region50: #{tpu_custom_call.1} parent=47 // pred_check_branch
          %336 = sbr.rel (%p334) target = $region52
        $region51: #{tpu_custom_call.1} parent=47 // pred_region
          %338 = dma.done [#allocation3], 16
        $region52: #{tpu_custom_call.1} parent=47 // pred_fallthru
          _
        %s339 = sand.u32 %s123, 1
        %s340 = scalar_lea.sflag [#allocation6], %s339
        %s341 = sand.u32 %s123, 1
        %s342 = smul.addr %s341, 32
        %s343 = scalar_lea.vmem [#allocation5], %s342
        // Predicated region
        $region53: #{tpu_custom_call.1} parent=47 // pred_check
          %p344 = pneg %p136
        $region54: #{tpu_custom_call.1} parent=47 // pred_check_branch
          %346 = sbr.rel (%p344) target = $region56
        $region55: #{tpu_custom_call.1} parent=47 // pred_region
          %348 = dma.done %s340, 512
        $region56: #{tpu_custom_call.1} parent=47 // pred_fallthru
          _
        %p349 = scmp.lt.s32.totalorder %s29, 0
        %s350 = scalar_select %p349, %s29, 0
        %s351 = scalar_lea.vmem %s0, %s350
        %p352 = pneg %p58
        %p353 = pneg %p55
        %p354 = pneg %p84
        %p355 = pneg %p81
        %p356 = scmp.lt.s32.totalorder %s29, 0
        %s357 = scalar_select %p356, %s29, 0
        %s358 = smul.addr %s357, 2
        %s359 = scalar_lea.vmem %s2, %s358
        %p360 = pneg %p110
        %p361 = pneg %p107
        %s362 = sand.u32 %s123, 1
        %s363 = scalar_lea.sflag [#allocation6], %s362
        %s364 = sand.u32 %s123, 1
        %s365 = smul.addr %s364, 32
        %s366 = scalar_lea.vmem [#allocation5], %s365
        %p367 = pneg %p136
        %p368 = pneg %p133
        %p369 = scmp.lt.s32.totalorder %s30, 1
        %s370 = scalar_select %p369, %s30, 1
        %s371 = scalar_lea.vmem %s4, %s370
        %p372 = pneg %p162
        %p373 = pneg %p159
        %p374 = scmp.lt.s32.totalorder %s30, 1
        %s375 = scalar_select %p374, %s30, 1
        %s376 = scalar_lea.vmem %s5, %s375
        %p377 = pneg %p188
        %p378 = pneg %p185
        %p379 = scmp.lt.s32.totalorder %s30, 1
        %s380 = scalar_select %p379, %s30, 1
        %s381 = scalar_lea.vmem %s6, %s380
        %p382 = pneg %p214
        %p383 = pneg %p211
        %p384 = pneg %p242
        %p385 = pneg %p239
        %s386 = sand.u32 %s229, 1
        %s387 = scalar_lea.sflag [#allocation4], %s386
        %s388 = sand.u32 %s229, 1
        %s389 = scalar_lea.vmem [#allocation7], %s388
        %p390 = scmp.lt.s32.totalorder %s29, 0
        %s391 = scalar_select %p390, %s29, 0
        %s392 = scalar_lea.vmem %s0, %s391
        %p393 = scmp.lt.s32.totalorder %s29, 0
        %s394 = scalar_select %p393, %s29, 0
        %s395 = smul.addr %s394, 2
        %s396 = scalar_lea.vmem %s2, %s395
        %s397 = smul.u32 4, %s30
        %p398 = scmp.lt.s32.totalorder %s30, 1
        %s399 = scalar_select %p398, %s30, 1
        %s400 = scalar_lea.vmem %s4, %s399
        %p401 = scmp.lt.s32.totalorder %s30, 1
        %s402 = scalar_select %p401, %s30, 1
        %s403 = scalar_lea.vmem %s5, %s402
        %p404 = scmp.lt.s32.totalorder %s30, 1
        %s405 = scalar_select %p404, %s30, 1
        %s406 = scalar_lea.vmem %s6, %s405
        %v407 = vld [vmem:[%s392] sm:$0x1]
        %v408 = vld [vmem:[#allocation2] sm:$0x1]
        %v409 = vld [vmem:[%s396] sm:$0x3]
        %v410 = vld [vmem:[%s400] sm:$0x1]
        %v411 = vld [vmem:[%s403] sm:$0x1]
        %v412 = vld [vmem:[%s343] sm:$0xff]
        %v413 = vld [vmem:[%s343 + $0x8] sm:$0xff]
        %v414 = vld [vmem:[%s343 + $0x10] sm:$0xff]
        %v415 = vld [vmem:[%s343 + $0x18] sm:$0xff]
        %v416 = vunpack.c.0.s8 %v412
        %v417 = vunpack.c.1.s8 %v412
        %v418 = vunpack.c.2.s8 %v412
        %v419 = vunpack.c.3.s8 %v412
        %v420 = vunpack.c.0.s8 %v413
        %v421 = vunpack.c.1.s8 %v413
        %v422 = vunpack.c.2.s8 %v413
        %v423 = vunpack.c.3.s8 %v413
        %v424 = vunpack.c.0.s8 %v414
        %v425 = vunpack.c.1.s8 %v414
        %v426 = vunpack.c.2.s8 %v414
        %v427 = vunpack.c.3.s8 %v414
        %v428 = vunpack.c.0.s8 %v415
        %v429 = vunpack.c.1.s8 %v415
        %v430 = vunpack.c.2.s8 %v415
        %v431 = vunpack.c.3.s8 %v415
        %v432 = vand.u32 %v416, 255
        %v433 = vand.u32 %v417, 255
        %v434 = vand.u32 %v418, 255
        %v435 = vand.u32 %v419, 255
        %v436 = vand.u32 %v420, 255
        %v437 = vand.u32 %v421, 255
        %v438 = vand.u32 %v422, 255
        %v439 = vand.u32 %v423, 255
        %v440 = vand.u32 %v424, 255
        %v441 = vand.u32 %v425, 255
        %v442 = vand.u32 %v426, 255
        %v443 = vand.u32 %v427, 255
        %v444 = vand.u32 %v428, 255
        %v445 = vand.u32 %v429, 255
        %v446 = vand.u32 %v430, 255
        %v447 = vand.u32 %v431, 255
        %v448 = vand.u32 %v432, 15
        %v449 = vand.u32 %v433, 15
        %v450 = vand.u32 %v434, 15
        %v451 = vand.u32 %v435, 15
        %v452 = vand.u32 %v436, 15
        %v453 = vand.u32 %v437, 15
        %v454 = vand.u32 %v438, 15
        %v455 = vand.u32 %v439, 15
        %v456 = vand.u32 %v440, 15
        %v457 = vand.u32 %v441, 15
        %v458 = vand.u32 %v442, 15
        %v459 = vand.u32 %v443, 15
        %v460 = vand.u32 %v444, 15
        %v461 = vand.u32 %v445, 15
        %v462 = vand.u32 %v446, 15
        %v463 = vand.u32 %v447, 15
        %v464 = vcvt.s32.f32 %v448
        %v465 = vcvt.s32.f32 %v449
        %v466 = vcvt.s32.f32 %v450
        %v467 = vcvt.s32.f32 %v451
        %v468 = vcvt.s32.f32 %v452
        %v469 = vcvt.s32.f32 %v453
        %v470 = vcvt.s32.f32 %v454
        %v471 = vcvt.s32.f32 %v455
        %v472 = vcvt.s32.f32 %v456
        %v473 = vcvt.s32.f32 %v457
        %v474 = vcvt.s32.f32 %v458
        %v475 = vcvt.s32.f32 %v459
        %v476 = vcvt.s32.f32 %v460
        %v477 = vcvt.s32.f32 %v461
        %v478 = vcvt.s32.f32 %v462
        %v479 = vcvt.s32.f32 %v463
        %v480 = vpack.c.bf16 %v465, %v464
        %v481 = vpack.c.bf16 %v467, %v466
        %v482 = vpack.c.bf16 %v469, %v468
        %v483 = vpack.c.bf16 %v471, %v470
        %v484 = vpack.c.bf16 %v473, %v472
        %v485 = vpack.c.bf16 %v475, %v474
        %v486 = vpack.c.bf16 %v477, %v476
        %v487 = vpack.c.bf16 %v479, %v478
        %v488 = vshra.s32 %v432, 4
        %v489 = vshra.s32 %v433, 4
        %v490 = vshra.s32 %v434, 4
        %v491 = vshra.s32 %v435, 4
        %v492 = vshra.s32 %v436, 4
        %v493 = vshra.s32 %v437, 4
        %v494 = vshra.s32 %v438, 4
        %v495 = vshra.s32 %v439, 4
        %v496 = vshra.s32 %v440, 4
        %v497 = vshra.s32 %v441, 4
        %v498 = vshra.s32 %v442, 4
        %v499 = vshra.s32 %v443, 4
        %v500 = vshra.s32 %v444, 4
        %v501 = vshra.s32 %v445, 4
        %v502 = vshra.s32 %v446, 4
        %v503 = vshra.s32 %v447, 4
        %v504 = vcvt.s32.f32 %v488
        %v505 = vcvt.s32.f32 %v489
        %v506 = vcvt.s32.f32 %v490
        %v507 = vcvt.s32.f32 %v491
        %v508 = vcvt.s32.f32 %v492
        %v509 = vcvt.s32.f32 %v493
        %v510 = vcvt.s32.f32 %v494
        %v511 = vcvt.s32.f32 %v495
        %v512 = vcvt.s32.f32 %v496
        %v513 = vcvt.s32.f32 %v497
        %v514 = vcvt.s32.f32 %v498
        %v515 = vcvt.s32.f32 %v499
        %v516 = vcvt.s32.f32 %v500
        %v517 = vcvt.s32.f32 %v501
        %v518 = vcvt.s32.f32 %v502
        %v519 = vcvt.s32.f32 %v503
        %v520 = vpack.c.bf16 %v505, %v504
        %v521 = vpack.c.bf16 %v507, %v506
        %v522 = vpack.c.bf16 %v509, %v508
        %v523 = vpack.c.bf16 %v511, %v510
        %v524 = vpack.c.bf16 %v513, %v512
        %v525 = vpack.c.bf16 %v515, %v514
        %v526 = vpack.c.bf16 %v517, %v516
        %v527 = vpack.c.bf16 %v519, %v518
        %528 = vmatpush.bf16.xpose.msra.mxu0 %v527
        %529 = vmatpush.bf16.xpose.msra.mxu0 %v526
        %530 = vmatpush.bf16.xpose.msra.mxu0 %v525
        %531 = vmatpush.bf16.xpose.msra.mxu0 %v524
        %532 = vmatpush.bf16.xpose.msra.mxu0 %v523
        %533 = vmatpush.bf16.xpose.msra.mxu0 %v522
        %534 = vmatpush.bf16.xpose.msra.mxu0 %v521
        %535 = vmatpush.bf16.xpose.msra.mxu0 %v520
        %536 = vmatmul.bf16.gmra.mxu0 %v408
        %v537 = vpop.f32.mrf.mxu0
        %v538 = vadd.f32 0.0, %v537
        %v539 = vpop.f32.mrf.mxu0
        %540 = vdwg.mxu0
        %541 = vmatpush.bf16.xpose.msra.mxu0 %v487
        %542 = vmatpush.bf16.xpose.msra.mxu0 %v486
        %543 = vmatpush.bf16.xpose.msra.mxu0 %v485
        %544 = vmatpush.bf16.xpose.msra.mxu0 %v484
        %545 = vmatpush.bf16.xpose.msra.mxu0 %v483
        %546 = vmatpush.bf16.xpose.msra.mxu0 %v482
        %547 = vmatpush.bf16.xpose.msra.mxu0 %v481
        %548 = vmatpush.bf16.xpose.msra.mxu0 %v480
        %549 = vmatmul.bf16.gmra.mxu0 %v407
        %v550 = vpop.f32.mrf.mxu0
        %v551 = vadd.f32 %v538, %v550
        %v552 = vpop.f32.mrf.mxu0
        %553 = vdwg.mxu0
        %v555 = vperm.slane %v410, 0
        %v557 = vmul.f32 %v551, %v555
        %v558 = vadd.f32 %v557, 0.0
        %560 = vset.pattern.permute.xlu0 0
        %561 = vperm.xlu0 %560, %v409
        %v562 = vpop.permute.xlu0 %561
        %v565 = vperm.slane %v411, 0
        %v567 = vmul.f32 %v562, %v565
        %v568 = vsub.f32 %v558, %v567
        %v569 = vld [vmem:[%s406] sm:$0x1]
        %v571 = vperm.slane %v569, 0
        %v573 = vadd.f32 %v568, %v571
        %v574 = vpack.c.bf16 %v573, %v573
        %575 = vst [vmem:[%s389] sm:$0x1] %v574
        %s576 = sand.u32 %s229, 1
        %s577 = scalar_lea.sflag [#allocation4], %s576
        %s578 = sand.u32 %s229, 1
        %s579 = scalar_lea.vmem [#allocation7], %s578
        // Predicated region
        $region57: #{tpu_custom_call.1} parent=47 // pred_check
          %p580 = pneg %p239
        $region58: #{tpu_custom_call.1} parent=47 // pred_check_branch
          %582 = sbr.rel (%p580) target = $region60
        $region59: #{tpu_custom_call.1} parent=47 // pred_region
          %584 = vsyncadd %s577, 0
          %s585 = smul.addr %s29, 2
          %s586 = sadd.s32 %s30, %s585
          %s587 = scalar_lea.hbm %s7, %s586
          %s589 = sshll.u32 %s579, 4
          %s590 = int_to_ptr.vmem [resolvable:$true] %s589
          %s591 = sshll.u32 %s587, 4
          %s592 = int_to_ptr.hbm [resolvable:$true] %s591
          %594 = dma.vmem_to_hbm [thread:$0]  %s590, 16, %s592, %s577
        $region60: #{tpu_custom_call.1} parent=47 // pred_fallthru
          _
      $region48: #{tpu_custom_call.1} parent=5 // pred_fallthru
        _
      %p595 = scmp.le.s32.totalorder 2, %s20
      // Predicated region
      $region61: #{tpu_custom_call.1} parent=5 // pred_check
        %p596 = pneg %p595
      $region62: #{tpu_custom_call.1} parent=5 // pred_check_branch
        %598 = sbr.rel (%p596) target = $region64
      $region63: #{tpu_custom_call.1} parent=5 // pred_region
        %s599 = ssub.s32 %s20, 2
        // Predicated region
        $region65: #{tpu_custom_call.1} parent=63 // pred_check
          %p600 = pneg %p245
        $region66: #{tpu_custom_call.1} parent=63 // pred_check_branch
          %602 = sbr.rel (%p600) target = $region68
        $region67: #{tpu_custom_call.1} parent=63 // pred_region
          %s603 = sand.u32 %s230, 1
          %s604 = scalar_lea.sflag [#allocation4], %s603
          %s605 = sand.u32 %s230, 1
          %s606 = scalar_lea.vmem [#allocation7], %s605
          %608 = dma.done %s604, 16
        $region68: #{tpu_custom_call.1} parent=63 // pred_fallthru
          _
      $region64: #{tpu_custom_call.1} parent=5 // pred_fallthru
        _
    $region6: #{tpu_custom_call.1} parent=1 // loop_footer
      %s24 = sadd.s32 1, %s20
    $region7: #{tpu_custom_call.1} parent=1 // loop_footer_branch
      %19 = sbr.rel target = $region3
    $region8: #{tpu_custom_call.1} parent=1 // loop_exit
      _
    %609 = vsyncpa [#allocation3], 1
    %s610 = scalar_lea.sflag [#allocation3], 1
    %611 = vsyncpa %s610, 1
    %612 = vsyncpa [#allocation6], 1
    %s613 = scalar_lea.sflag [#allocation6], 1
    %614 = vsyncpa %s613, 1
    %615 = vsyncpa [#allocation4], 1
    %s616 = scalar_lea.sflag [#allocation4], 1
    %617 = vsyncpa %s616, 1

</llo_original>
